<compile_context>
chip_gen: v5e
topology: v5e:2x2
jax: 0.10.0
libtpu: 0.0.40
codegen_flags: <defaults>
</compile_context>

<pallas_src>
import functools

import jax
import jax.numpy as jnp
from jax.experimental import pallas as pl
from jax.experimental.pallas import tpu as pltpu

_LANE = 128
_MiB = 1 << 20


def _round_up(x, m):
    return (x + m - 1) // m * m


def _sublanes(dtype):
    # Native sublane packing of one (sublane, 128) tile: f32 -> 8, bf16 -> 16,
    # int8/uint8 -> 32.
    return max(8, 32 // jnp.dtype(dtype).itemsize)


def _vmem_budget():
    """Returns (vmem_limit_bytes, usable budget for blocks + accumulators)."""
    try:
        cap = int(pltpu.get_tpu_info().vmem_capacity_bytes)
    except Exception:
        cap = 64 * _MiB  # conservative (v7x per-TensorCore VMEM)
    # ~80 MiB on 128 MiB chips (v5e/v6e), ~40 MiB on 64 MiB chips (v7x).
    limit = max(32 * _MiB, min(cap * 5 // 8, 96 * _MiB))
    return limit, limit - 4 * _MiB  # headroom for Mosaic internals


def _num_cores():
    """TensorCores a 'parallel' grid axis can be split across."""
    try:
        kind = jax.devices()[0].device_kind.lower()
    except Exception:
        return 1
    if "lite" in kind or "v5e" in kind or "v6" in kind:
        return 1
    if "v7" in kind or "v5p" in kind or "v4" in kind:
        return 2
    return 1


# --------------------------------------------------------------------------
# Kernels
# --------------------------------------------------------------------------
def _flat_kernel(p_ref, l_ref, m_ref, num_ref, den_ref, acc_num, acc_den,
                 *, steps, valid_rows, apply_mask):
    """mask has the same shape as pred: flat lane-dense (R, 128) blocks."""
    step = pl.program_id(1)

    @pl.when(step == 0)
    def _():
        acc_num[...] = jnp.zeros_like(acc_num)
        acc_den[...] = jnp.zeros_like(acc_den)

    p = p_ref[...].astype(jnp.float32)          # (R, 128)
    l = l_ref[...].astype(jnp.float32)
    m = m_ref[...].astype(jnp.float32)
    d = jnp.abs(p - l) * m

    if apply_mask:
        # Zero rows belonging to the out-of-bounds tail of the last block /
        # phantom core-balancing blocks (their DMA index is clamped).
        row0 = (pl.program_id(0) * steps + step) * p_ref.shape[0]
        rid = jax.lax.broadcasted_iota(jnp.int32, d.shape, 0) + row0
        ok = rid < valid_rows
        d = jnp.where(ok, d, 0.0)
        m = jnp.where(ok, m, 0.0)

    # Reduce over the row axis only: vector adds into a one-vreg accumulator.
    acc_num[...] += jnp.sum(d, axis=0, keepdims=True)   # (1, 128)
    acc_den[...] += jnp.sum(m, axis=0, keepdims=True)   # (1, 128)

    # Single cross-lane reduction + SMEM scalar store, once per core.
    @pl.when(step == pl.num_programs(1) - 1)
    def _():
        num_ref[0, 0] = jnp.sum(acc_num[...])
        den_ref[0, 0] = jnp.sum(acc_den[...])


def _bcast_kernel(p_ref, l_ref, m_ref, num_ref, den_ref, acc_num, acc_den,
                  *, steps, valid_cols, apply_mask):
    """mask is (N, 1, *): channel broadcast on-chip, spatial tiling only."""
    step = pl.program_id(1)

    @pl.when(step == 0)
    def _():
        acc_num[...] = jnp.zeros_like(acc_num)
        acc_den[...] = jnp.zeros_like(acc_den)

    p = p_ref[...].astype(jnp.float32)          # (N, C, T_S)
    l = l_ref[...].astype(jnp.float32)
    m = m_ref[...].astype(jnp.float32)          # (N, 1, T_S)
    d = jnp.abs(p - l) * m                      # on-chip channel broadcast

    if apply_mask:
        col0 = (pl.program_id(0) * steps + step) * p_ref.shape[2]
        cid_d = jax.lax.broadcasted_iota(jnp.int32, d.shape, 2) + col0
        cid_m = jax.lax.broadcasted_iota(jnp.int32, m.shape, 2) + col0
        d = jnp.where(cid_d < valid_cols, d, 0.0)
        m = jnp.where(cid_m < valid_cols, m, 0.0)

    acc_num[...] += jnp.sum(d, axis=0)          # (C, T_S) batch-axis reduce
    acc_den[...] += jnp.sum(m, axis=0)          # (1, T_S)

    @pl.when(step == pl.num_programs(1) - 1)
    def _():
        num_ref[0, 0] = jnp.sum(acc_num[...])
        den_ref[0, 0] = jnp.sum(acc_den[...])


# --------------------------------------------------------------------------
# Launchers
# --------------------------------------------------------------------------
def _masked_l1_flat(pred, label, mask, block_cap):
    total = pred.size
    dts = (pred.dtype, label.dtype, mask.dtype)
    row_align = max(_sublanes(dt) for dt in dts)
    bytes_per_row = _LANE * sum(jnp.dtype(dt).itemsize for dt in dts)

    p = pred.reshape(-1)
    l = label.reshape(-1)
    m = mask.reshape(-1)

    # Tiny zero-pad (< one row-aligned tile) only when the flat size is not a
    # multiple of 128*row_align; zeros contribute 0 to both sums.
    total_pad = _round_up(total, _LANE * row_align)
    if total_pad != total:
        pz = total_pad - total
        p = jnp.pad(p, (0, pz))
        l = jnp.pad(l, (0, pz))
        m = jnp.pad(m, (0, pz))
    rows = total_pad // _LANE

    vmem_limit, budget = _vmem_budget()
    acc_bytes = 2 * 8 * _LANE * 4
    per_block = min((budget - acc_bytes) // 2, block_cap)   # /2: double buffer
    max_rows = max(row_align, per_block // bytes_per_row // row_align * row_align)
    r_blk = min(max_rows, rows)

    nblocks = pl.cdiv(rows, r_blk)
    splits = min(_num_cores(), nblocks)
    nblocks_r = _round_up(nblocks, splits)
    steps = nblocks_r // splits
    apply_mask = (rows % r_blk != 0) or (nblocks_r != nblocks)
    last = nblocks - 1

    def idx(c, i):
        return (jnp.minimum(c * steps + i, last), 0)

    in_spec = pl.BlockSpec((r_blk, _LANE), idx)
    out_spec = pl.BlockSpec((1, 1), lambda c, i: (c, 0),
                            memory_space=pltpu.MemorySpace.SMEM)

    kernel = functools.partial(_flat_kernel, steps=steps, valid_rows=rows,
                               apply_mask=apply_mask)
    num, den = pl.pallas_call(
        kernel,
        out_shape=(jax.ShapeDtypeStruct((splits, 1), jnp.float32),
                   jax.ShapeDtypeStruct((splits, 1), jnp.float32)),
        grid=(splits, steps),
        in_specs=[in_spec, in_spec, in_spec],
        out_specs=(out_spec, out_spec),
        scratch_shapes=[pltpu.VMEM((1, _LANE), jnp.float32),
                        pltpu.VMEM((1, _LANE), jnp.float32)],
        compiler_params=pltpu.CompilerParams(
            dimension_semantics=("parallel", "arbitrary"),
            vmem_limit_bytes=vmem_limit),
    )(p.reshape(rows, _LANE), l.reshape(rows, _LANE), m.reshape(rows, _LANE))
    return jnp.sum(num), jnp.sum(den)


def _masked_l1_bcast(pred, label, mask, block_cap):
    N, C, H, W = pred.shape
    S = H * W
    p = pred.reshape(N, C, S)
    l = label.reshape(N, C, S)
    m = mask.reshape(N, 1, S)

    s_pad = _round_up(S, _LANE)
    if s_pad != S:  # tiny spatial zero-pad only for awkward H*W
        pz = s_pad - S
        p = jnp.pad(p, ((0, 0), (0, 0), (0, pz)))
        l = jnp.pad(l, ((0, 0), (0, 0), (0, pz)))
        m = jnp.pad(m, ((0, 0), (0, 0), (0, pz)))
    lanes = s_pad // _LANE

    vmem_limit, budget = _vmem_budget()
    # Honest per-128-lane byte footprint, *including* sublane padding of the
    # small channel dim (f32 -> 8, bf16 -> 16, int8 -> 32).
    in_chunk = _LANE * N * (
        _round_up(C, _sublanes(pred.dtype)) * jnp.dtype(pred.dtype).itemsize
        + _round_up(C, _sublanes(label.dtype)) * jnp.dtype(label.dtype).itemsize
        + _round_up(1, _sublanes(mask.dtype)) * jnp.dtype(mask.dtype).itemsize)
    acc_chunk = _LANE * 4 * (_round_up(C, 8) + 8)
    chunks = max(1, min(budget // (2 * in_chunk + acc_chunk),
                        block_cap // in_chunk,
                        lanes))
    # TODO(synk): if even a single 128-lane chunk blows the budget (huge N*C),
    # additionally tile over the batch axis instead of relying on Mosaic.
    t_s = chunks * _LANE

    nblocks = pl.cdiv(lanes, chunks)
    splits = min(_num_cores(), nblocks)
    nblocks_r = _round_up(nblocks, splits)
    steps = nblocks_r // splits
    apply_mask = (lanes % chunks != 0) or (nblocks_r != nblocks)
    last = nblocks - 1

    def idx(c, i):
        return (0, 0, jnp.minimum(c * steps + i, last))

    pl_spec = pl.BlockSpec((N, C, t_s), idx)
    m_spec = pl.BlockSpec((N, 1, t_s), idx)
    out_spec = pl.BlockSpec((1, 1), lambda c, i: (c, 0),
                            memory_space=pltpu.MemorySpace.SMEM)

    kernel = functools.partial(_bcast_kernel, steps=steps, valid_cols=s_pad,
                               apply_mask=apply_mask)
    num, den = pl.pallas_call(
        kernel,
        out_shape=(jax.ShapeDtypeStruct((splits, 1), jnp.float32),
                   jax.ShapeDtypeStruct((splits, 1), jnp.float32)),
        grid=(splits, steps),
        in_specs=[pl_spec, pl_spec, m_spec],
        out_specs=(out_spec, out_spec),
        scratch_shapes=[pltpu.VMEM((C, t_s), jnp.float32),
                        pltpu.VMEM((1, t_s), jnp.float32)],
        compiler_params=pltpu.CompilerParams(
            dimension_semantics=("parallel", "arbitrary"),
            vmem_limit_bytes=vmem_limit),
    )(p, l, m)
    return jnp.sum(num), jnp.sum(den)


# --------------------------------------------------------------------------
# Public wrapper
# --------------------------------------------------------------------------
def spatial_mask_loss(pred, label, mask, *, block_bytes=None):
    """loss = sum(|pred - label| * mask) / (sum(expanded mask) + 1e-6)."""
    N, C, H, W = pred.shape
    assert label.shape == pred.shape
    assert mask.shape[0] == N and mask.shape[2:] == (H, W)
    Cm = mask.shape[1]
    assert Cm in (1, C), "mask must have 1 or C channels"

    # mask.float() semantics; a bool mask ships as int8 (1 byte/elem of HBM
    # traffic) and is upcast to f32 on-chip — never materialize f32 in HBM.
    if mask.dtype == jnp.bool_:
        mask = mask.astype(jnp.int8)

    block_cap = 24 * _MiB if block_bytes is None else int(block_bytes)

    if Cm == C:
        num, den = _masked_l1_flat(pred, label, mask, block_cap)
        chan = 1.0
    else:
        num, den = _masked_l1_bcast(pred, label, mask, block_cap)
        chan = float(C)  # sum of the (never materialized) expanded mask

    return num / (den * chan + 1e-6)


# --------------------------------------------------------------------------
# Tests
# --------------------------------------------------------------------------
if __name__ == "__main__":
    def ref_loss(pred, label, mask):
        m = mask.astype(jnp.float32)
        if m.shape[1] == 1 and pred.shape[1] > 1:
            m = jnp.broadcast_to(m, pred.shape)
        d = jnp.abs(pred.astype(jnp.float32) - label.astype(jnp.float32)) * m
        return jnp.sum(d) / (jnp.sum(m) + 1e-6)

    key = jax.random.PRNGKey(0)
    ks = jax.random.split(key, 12)

    # Case 1: (N, 1, H, W) float mask -> on-chip channel-broadcast path.
    N, C, H, W = 2, 4, 16, 16
    pred = jax.random.normal(ks[0], (N, C, H, W), dtype=jnp.float32)
    label = jax.random.normal(ks[1], (N, C, H, W), dtype=jnp.float32)
    mask = (jax.random.uniform(ks[2], (N, 1, H, W)) > 0.5).astype(jnp.float32)
    out = jax.block_until_ready(spatial_mask_loss(pred, label, mask))
    ref = ref_loss(pred, label, mask)
    assert jnp.allclose(out, ref, rtol=1e-5, atol=1e-6), (out, ref)

    # Case 2: full C-channel mask, spatial size not a multiple of 128
    #         -> flat lane-dense path + tiny zero pad.
    N2, C2, H2, W2 = 2, 3, 10, 12
    pred2 = jax.random.normal(ks[3], (N2, C2, H2, W2), dtype=jnp.float32)
    label2 = jax.random.normal(ks[4], (N2, C2, H2, W2), dtype=jnp.float32)
    mask2 = jax.random.uniform(ks[5], (N2, C2, H2, W2), dtype=jnp.float32)
    out2 = jax.block_until_ready(spatial_mask_loss(pred2, label2, mask2))
    ref2 = ref_loss(pred2, label2, mask2)
    assert jnp.allclose(out2, ref2, rtol=1e-5, atol=1e-6), (out2, ref2)

    # Case 3: bf16 pred/label + boolean 1-channel mask (int8 streaming path).
    N3, C3, H3, W3 = 2, 4, 16, 24
    pred3 = jax.random.normal(ks[6], (N3, C3, H3, W3), dtype=jnp.bfloat16)
    label3 = jax.random.normal(ks[7], (N3, C3, H3, W3), dtype=jnp.bfloat16)
    mask3 = jax.random.uniform(ks[8], (N3, 1, H3, W3)) > 0.3
    out3 = jax.block_until_ready(spatial_mask_loss(pred3, label3, mask3))
    ref3 = ref_loss(pred3, label3, mask3)
    assert jnp.allclose(out3, ref3, rtol=2e-3, atol=1e-5), (out3, ref3)

    # Case 4: force small blocks so the flat path exercises partial last
    #         blocks + in-kernel tail masking.
    N4, C4, H4, W4 = 2, 4, 32, 32
    pred4 = jax.random.normal(ks[9], (N4, C4, H4, W4), dtype=jnp.float32)
    label4 = jax.random.normal(ks[10], (N4, C4, H4, W4), dtype=jnp.float32)
    mask4 = jax.random.uniform(ks[11], (N4, C4, H4, W4), dtype=jnp.float32)
    out4 = jax.block_until_ready(
        spatial_mask_loss(pred4, label4, mask4, block_bytes=40_000))
    ref4 = ref_loss(pred4, label4, mask4)
    assert jnp.allclose(out4, ref4, rtol=1e-5, atol=1e-6), (out4, ref4)

    # Case 5: force small spatial tiles so the broadcast path exercises
    #         partial last blocks + in-kernel tail masking.
    pred5 = jax.random.normal(ks[0], (2, 4, 16, 40), dtype=jnp.float32)
    label5 = jax.random.normal(ks[1], (2, 4, 16, 40), dtype=jnp.float32)
    mask5 = jax.random.uniform(ks[2], (2, 1, 16, 40), dtype=jnp.float32)
    out5 = jax.block_until_ready(
        spatial_mask_loss(pred5, label5, mask5, block_bytes=60_000))
    ref5 = ref_loss(pred5, label5, mask5)
    assert jnp.allclose(out5, ref5, rtol=1e-5, atol=1e-6), (out5, ref5)

    print("KERNEL_OK")
</pallas_src>

<mosaic_0001>
module attributes {stable_mosaic.version = 11 : i64} {
  func.func @_bcast_kernel(%arg0: i32, %arg1: i32, %arg2: memref<2x4x256xf32, #tpu.memory_space<vmem>>, %arg3: memref<2x4x256xf32, #tpu.memory_space<vmem>>, %arg4: memref<2x1x256xf32, #tpu.memory_space<vmem>>, %arg5: memref<1x1xf32, #tpu.memory_space<smem>>, %arg6: memref<1x1xf32, #tpu.memory_space<smem>>, %arg7: memref<4x256xf32, #tpu.memory_space<vmem>>, %arg8: memref<1x256xf32, #tpu.memory_space<vmem>>) attributes {dimension_semantics = [#tpu.dimension_semantics<parallel>, #tpu.dimension_semantics<arbitrary>], iteration_bounds = array<i64: 1, 1>, scalar_prefetch = 0 : i64, scratch_operands = 2 : i64, tpu.core_type = #tpu.core_type<tc>, window_params = [{transform_indices = @transform_0, window_bounds = array<i64: 2, 4, 256>}, {transform_indices = @transform_1, window_bounds = array<i64: 2, 4, 256>}, {transform_indices = @transform_2, window_bounds = array<i64: 2, 1, 256>}, {transform_indices = @transform_3, window_bounds = array<i64: 1, 1>}, {transform_indices = @transform_4, window_bounds = array<i64: 1, 1>}]} {
    %c0_i32 = arith.constant 0 : i32
    %0 = arith.cmpi eq, %arg1, %c0_i32 : i32
    %1 = arith.extui %0 : i1 to i32
    %c0_i32_0 = arith.constant 0 : i32
    %2 = arith.cmpi ne, %1, %c0_i32_0 : i32
    scf.if %2 {
      %cst_20 = arith.constant 0.000000e+00 : f32
      %21 = vector.broadcast %cst_20 : f32 to vector<4x256xf32>
      %c0_21 = arith.constant 0 : index
      %c0_22 = arith.constant 0 : index
      %22 = vector.load %arg7[%c0_21, %c0_22] : memref<4x256xf32, #tpu.memory_space<vmem>>, vector<4x256xf32>
      tpu.vector_store %arg7[%c0_21, %c0_22], %21 {strides = array<i32>} : memref<4x256xf32, #tpu.memory_space<vmem>>, vector<4x256xf32>,
      %cst_23 = arith.constant 0.000000e+00 : f32
      %23 = vector.broadcast %cst_23 : f32 to vector<1x256xf32>
      %c0_24 = arith.constant 0 : index
      %c0_25 = arith.constant 0 : index
      %24 = vector.load %arg8[%c0_24, %c0_25] : memref<1x256xf32, #tpu.memory_space<vmem>>, vector<1x256xf32>
      tpu.vector_store %arg8[%c0_24, %c0_25], %23 {strides = array<i32>} : memref<1x256xf32, #tpu.memory_space<vmem>>, vector<1x256xf32>,
    } else {
    }
    %c0 = arith.constant 0 : index
    %c0_1 = arith.constant 0 : index
    %c0_2 = arith.constant 0 : index
    %3 = vector.load %arg2[%c0, %c0_1, %c0_2] : memref<2x4x256xf32, #tpu.memory_space<vmem>>, vector<2x4x256xf32>
    %c0_3 = arith.constant 0 : index
    %c0_4 = arith.constant 0 : index
    %c0_5 = arith.constant 0 : index
    %4 = vector.load %arg3[%c0_3, %c0_4, %c0_5] : memref<2x4x256xf32, #tpu.memory_space<vmem>>, vector<2x4x256xf32>
    %c0_6 = arith.constant 0 : index
    %c0_7 = arith.constant 0 : index
    %c0_8 = arith.constant 0 : index
    %5 = vector.load %arg4[%c0_6, %c0_7, %c0_8] : memref<2x1x256xf32, #tpu.memory_space<vmem>>, vector<2x1x256xf32>
    %6 = arith.subf %3, %4 : vector<2x4x256xf32>
    %7 = math.absf %6 : vector<2x4x256xf32>
    %8 = vector.broadcast %5 : vector<2x1x256xf32> to vector<2x4x256xf32>
    %9 = arith.mulf %7, %8 : vector<2x4x256xf32>
    %c0_9 = arith.constant 0 : index
    %c0_10 = arith.constant 0 : index
    %10 = vector.load %arg7[%c0_9, %c0_10] : memref<4x256xf32, #tpu.memory_space<vmem>>, vector<4x256xf32>
    %cst = arith.constant dense<0.000000e+00> : vector<4x256xf32>
    %11 = vector.multi_reduction <add>, %9, %cst [0] : vector<2x4x256xf32> to vector<4x256xf32>
    %12 = arith.addf %10, %11 : vector<4x256xf32>
    %c0_11 = arith.constant 0 : index
    %c0_12 = arith.constant 0 : index
    %13 = vector.load %arg7[%c0_11, %c0_12] : memref<4x256xf32, #tpu.memory_space<vmem>>, vector<4x256xf32>
    tpu.vector_store %arg7[%c0_11, %c0_12], %12 {strides = array<i32>} : memref<4x256xf32, #tpu.memory_space<vmem>>, vector<4x256xf32>,
    %c0_13 = arith.constant 0 : index
    %c0_14 = arith.constant 0 : index
    %14 = vector.load %arg8[%c0_13, %c0_14] : memref<1x256xf32, #tpu.memory_space<vmem>>, vector<1x256xf32>
    %cst_15 = arith.constant dense<0.000000e+00> : vector<1x256xf32>
    %15 = vector.multi_reduction <add>, %5, %cst_15 [0] : vector<2x1x256xf32> to vector<1x256xf32>
    %16 = arith.addf %14, %15 : vector<1x256xf32>
    %c0_16 = arith.constant 0 : index
    %c0_17 = arith.constant 0 : index
    %17 = vector.load %arg8[%c0_16, %c0_17] : memref<1x256xf32, #tpu.memory_space<vmem>>, vector<1x256xf32>
    tpu.vector_store %arg8[%c0_16, %c0_17], %16 {strides = array<i32>} : memref<1x256xf32, #tpu.memory_space<vmem>>, vector<1x256xf32>,
    %c0_i32_18 = arith.constant 0 : i32
    %18 = arith.cmpi eq, %arg1, %c0_i32_18 : i32
    %19 = arith.extui %18 : i1 to i32
    %c0_i32_19 = arith.constant 0 : i32
    %20 = arith.cmpi ne, %19, %c0_i32_19 : i32
    scf.if %20 {
      %c0_20 = arith.constant 0 : index
      %c0_21 = arith.constant 0 : index
      %21 = vector.load %arg7[%c0_20, %c0_21] : memref<4x256xf32, #tpu.memory_space<vmem>>, vector<4x256xf32>
      %22 = vector.shape_cast %21 : vector<4x256xf32> to vector<1x4x256xf32>
      %cst_22 = arith.constant dense<0.000000e+00> : vector<1xf32>
      %23 = vector.multi_reduction <add>, %22, %cst_22 [1, 2] : vector<1x4x256xf32> to vector<1xf32>
      %24 = vector.shape_cast %23 : vector<1xf32> to vector<1x1x1xf32>
      %25 = vector.extract %24[0, 0, 0] : f32 from vector<1x1x1xf32>
      %c0_23 = arith.constant 0 : index
      %c0_24 = arith.constant 0 : index
      %26 = memref.load %arg5[%c0_23, %c0_24] : memref<1x1xf32, #tpu.memory_space<smem>>
      memref.store %25, %arg5[%c0_23, %c0_24] : memref<1x1xf32, #tpu.memory_space<smem>>
      %c0_25 = arith.constant 0 : index
      %c0_26 = arith.constant 0 : index
      %27 = vector.load %arg8[%c0_25, %c0_26] : memref<1x256xf32, #tpu.memory_space<vmem>>, vector<1x256xf32>
      %28 = vector.shape_cast %27 : vector<1x256xf32> to vector<1x1x256xf32>
      %cst_27 = arith.constant dense<0.000000e+00> : vector<1xf32>
      %29 = vector.multi_reduction <add>, %28, %cst_27 [1, 2] : vector<1x1x256xf32> to vector<1xf32>
      %30 = vector.shape_cast %29 : vector<1xf32> to vector<1x1x1xf32>
      %31 = vector.extract %30[0, 0, 0] : f32 from vector<1x1x1xf32>
      %c0_28 = arith.constant 0 : index
      %c0_29 = arith.constant 0 : index
      %32 = memref.load %arg6[%c0_28, %c0_29] : memref<1x1xf32, #tpu.memory_space<smem>>
      memref.store %31, %arg6[%c0_28, %c0_29] : memref<1x1xf32, #tpu.memory_space<smem>>
    } else {
    }
    return
  }
  func.func @transform_0(%arg0: i32, %arg1: i32) -> (i32, i32, i32) {
    %c1_i32 = arith.constant 1 : i32
    %0 = arith.muli %arg0, %c1_i32 : i32
    %1 = arith.addi %0, %arg1 : i32
    %c0_i32 = arith.constant 0 : i32
    %2 = arith.minsi %1, %c0_i32 : i32
    %c0_i32_0 = arith.constant 0 : i32
    %c0_i32_1 = arith.constant 0 : i32
    %c0_i32_2 = arith.constant 0 : i32
    return %c0_i32_0, %c0_i32_1, %2 : i32, i32, i32
  }
  func.func @transform_1(%arg0: i32, %arg1: i32) -> (i32, i32, i32) {
    %c1_i32 = arith.constant 1 : i32
    %0 = arith.muli %arg0, %c1_i32 : i32
    %1 = arith.addi %0, %arg1 : i32
    %c0_i32 = arith.constant 0 : i32
    %2 = arith.minsi %1, %c0_i32 : i32
    %c0_i32_0 = arith.constant 0 : i32
    %c0_i32_1 = arith.constant 0 : i32
    %c0_i32_2 = arith.constant 0 : i32
    return %c0_i32_0, %c0_i32_1, %2 : i32, i32, i32
  }
  func.func @transform_2(%arg0: i32, %arg1: i32) -> (i32, i32, i32) {
    %c1_i32 = arith.constant 1 : i32
    %0 = arith.muli %arg0, %c1_i32 : i32
    %1 = arith.addi %0, %arg1 : i32
    %c0_i32 = arith.constant 0 : i32
    %2 = arith.minsi %1, %c0_i32 : i32
    %c0_i32_0 = arith.constant 0 : i32
    %c0_i32_1 = arith.constant 0 : i32
    %c0_i32_2 = arith.constant 0 : i32
    return %c0_i32_0, %c0_i32_1, %2 : i32, i32, i32
  }
  func.func @transform_3(%arg0: i32, %arg1: i32) -> (i32, i32) {
    %c0_i32 = arith.constant 0 : i32
    %c0_i32_0 = arith.constant 0 : i32
    return %arg0, %c0_i32 : i32, i32
  }
  func.func @transform_4(%arg0: i32, %arg1: i32) -> (i32, i32) {
    %c0_i32 = arith.constant 0 : i32
    %c0_i32_0 = arith.constant 0 : i32
    return %arg0, %c0_i32 : i32, i32
  }
}

</mosaic_0001>

<llo_original>
// kernel: tpu_custom_call.1
$region0: #{tpu_custom_call.1}
  #allocation0 [shape = 'u32[]', space=smem, size = 0x4, offset = 0x4, fixed_abs, tag = 'smem constant byte address 0x4 - core index']
  #allocation1 [shape = 'u32[72,128]{1,0:T(1,128)}', space=vmem, size = 0x9000, scoped, tag = 'internal scratch']
  #allocation2 [shape = 'f32[4,256]{1,0:T(4,128)}', space=vmem, size = 0x1000, scoped, tag = 'scratch operand']
  #allocation3 [shape = 'f32[1,256]{1,0:T(1,128)}', space=vmem, size = 0x400, scoped, tag = 'scratch operand']
  %s0 = inlined_call_operand.hbm [shape: f32[2,4,256], index: 0, kind: input, shape index: {}]
  %s1 = inlined_call_operand.hbm [shape: f32[2,4,256], index: 1, kind: input, shape index: {}]
  %s2 = inlined_call_operand.hbm [shape: f32[2,1,256], index: 2, kind: input, shape index: {}]
  %s3 = inlined_call_operand.hbm [shape: f32[1,1], index: 3, kind: output, shape index: {0}]
  %s4 = inlined_call_operand.hbm [shape: f32[1,1], index: 4, kind: output, shape index: {1}]
  %5 = xla_tuple %s3, %s4
  %s6 = sld [smem:[#allocation0]]
  $region50: #{tpu_custom_call.1} parent=0
    _
  %s8 = ssub.s32 1, %s6
  %s9 = scalar_select 0, %s8, %s6
  $region1: #{tpu_custom_call.1} parent=0
    #allocation4 [shape = 'u8[8192]{0}', space=vmem, size = 0x2000, scoped, tag = 'input window, operand 0, single buffered']
    #allocation5 [shape = 's32[1]{0}', space=sflag, size = 0x4, scoped, tag = 'scoped memory for tpu_custom_call.1']
    #allocation6 [shape = 's32[1]{0}', space=sflag, size = 0x4, scoped, tag = 'scoped memory for tpu_custom_call.1']
    #allocation7 [shape = 'u8[8192]{0}', space=vmem, size = 0x2000, scoped, tag = 'input window, operand 1, single buffered']
    #allocation8 [shape = 's32[1]{0}', space=sflag, size = 0x4, scoped, tag = 'scoped memory for tpu_custom_call.1']
    #allocation9 [shape = 'u8[2048]{0}', space=vmem, size = 0x800, scoped, tag = 'input window, operand 2, single buffered']
    #allocation10 [shape = 'u8[512]{0}', space=smem, size = 0x200, scoped, tag = 'output window, operand 0, single buffered']
    #allocation11 [shape = 'u8[512]{0}', space=smem, size = 0x200, scoped, tag = 'output window, operand 1, single buffered']
    #allocation12 [shape = 's32[1]{0}', space=sflag, size = 0x4, scoped, tag = 'scoped memory for tpu_custom_call.1']
    %10 = vsyncpa [#allocation5], 0
    %11 = vsyncpa [#allocation8], 0
    %12 = vsyncpa [#allocation6], 0
    %13 = vsyncpa [#allocation12], 0
    // Predicated region
    $region2: #{tpu_custom_call.1} parent=1 // pred_check
      _
    $region3: #{tpu_custom_call.1} parent=1 // pred_check_branch
      %15 = sbr.rel (0) target = $region5
    $region4: #{tpu_custom_call.1} parent=1 // pred_region
      %s16 = sadd.s32 0, 0
      %p17 = scmp.lt.s32.totalorder %s16, 0
      %s18 = scalar_select %p17, %s16, 0
      %s19 = smul.u32 2, %s18
      %21 = vsyncadd [#allocation5], 0
      %s22 = smul.addr %s19, 4
      %s23 = scalar_lea.hbm %s0, %s22
      %s24 = sshll.u32 %s23, 4
      %s25 = int_to_ptr.hbm [resolvable:$true] %s24
      %s26 = sshll.u32 [#allocation4], 4
      %s27 = int_to_ptr.vmem [resolvable:$true] %s26
      %32 = dma.hbm_to_vmem [thread:$0]  %s25, 256, %s27, [#allocation5], 128, 128, 8
    $region5: #{tpu_custom_call.1} parent=1 // pred_fallthru
      _
    // Predicated region
    $region6: #{tpu_custom_call.1} parent=1 // pred_check
      _
    $region7: #{tpu_custom_call.1} parent=1 // pred_check_branch
      %34 = sbr.rel (0) target = $region9
    $region8: #{tpu_custom_call.1} parent=1 // pred_region
      %s35 = sadd.s32 0, 0
      %p36 = scmp.lt.s32.totalorder %s35, 0
      %s37 = scalar_select %p36, %s35, 0
      %s38 = smul.u32 2, %s37
      %40 = vsyncadd [#allocation8], 0
      %s41 = smul.addr %s38, 4
      %s42 = scalar_lea.hbm %s1, %s41
      %s43 = sshll.u32 %s42, 4
      %s44 = int_to_ptr.hbm [resolvable:$true] %s43
      %s45 = sshll.u32 [#allocation7], 4
      %s46 = int_to_ptr.vmem [resolvable:$true] %s45
      %51 = dma.hbm_to_vmem [thread:$0]  %s44, 256, %s46, [#allocation8], 128, 128, 8
    $region9: #{tpu_custom_call.1} parent=1 // pred_fallthru
      _
    // Predicated region
    $region10: #{tpu_custom_call.1} parent=1 // pred_check
      _
    $region11: #{tpu_custom_call.1} parent=1 // pred_check_branch
      %53 = sbr.rel (0) target = $region13
    $region12: #{tpu_custom_call.1} parent=1 // pred_region
      %s54 = sadd.s32 0, 0
      %p55 = scmp.lt.s32.totalorder %s54, 0
      %s56 = scalar_select %p55, %s54, 0
      %s57 = smul.u32 2, %s56
      %59 = vsyncadd [#allocation8], 0
      %s60 = scalar_lea.hbm %s2, %s57
      %s61 = sshll.u32 %s60, 4
      %s62 = int_to_ptr.hbm [resolvable:$true] %s61
      %s63 = sshll.u32 [#allocation9], 4
      %s64 = int_to_ptr.vmem [resolvable:$true] %s63
      %69 = dma.hbm_to_vmem [thread:$0]  %s62, 64, %s64, [#allocation8], 32, 32, 2
    $region13: #{tpu_custom_call.1} parent=1 // pred_fallthru
      _
    // Predicated region
    $region14: #{tpu_custom_call.1} parent=1 // pred_check
      _
    $region15: #{tpu_custom_call.1} parent=1 // pred_check_branch
      %71 = sbr.rel (0) target = $region17
    $region16: #{tpu_custom_call.1} parent=1 // pred_region
      %73 = dma.done [#allocation5], 256
    $region17: #{tpu_custom_call.1} parent=1 // pred_fallthru
      _
    // Predicated region
    $region18: #{tpu_custom_call.1} parent=1 // pred_check
      _
    $region19: #{tpu_custom_call.1} parent=1 // pred_check_branch
      %75 = sbr.rel (0) target = $region21
    $region20: #{tpu_custom_call.1} parent=1 // pred_region
      %77 = dma.done [#allocation8], 256
    $region21: #{tpu_custom_call.1} parent=1 // pred_fallthru
      _
    // Predicated region
    $region22: #{tpu_custom_call.1} parent=1 // pred_check
      _
    $region23: #{tpu_custom_call.1} parent=1 // pred_check_branch
      %79 = sbr.rel (0) target = $region25
    $region24: #{tpu_custom_call.1} parent=1 // pred_region
      %81 = dma.done [#allocation8], 64
    $region25: #{tpu_custom_call.1} parent=1 // pred_fallthru
      _
    %s82 = sadd.s32 0, 0
    %p83 = scmp.lt.s32.totalorder %s82, 0
    %s84 = scalar_select %p83, %s82, 0
    %s85 = smul.u32 2, %s84
    %s86 = sadd.s32 0, 0
    %p87 = scmp.lt.s32.totalorder %s86, 0
    %s88 = scalar_select %p87, %s86, 0
    %s89 = smul.u32 2, %s88
    %s90 = sadd.s32 0, 0
    %p91 = scmp.lt.s32.totalorder %s90, 0
    %s92 = scalar_select %p91, %s90, 0
    %s93 = smul.u32 2, %s92
    %p94 = scmp.eq.s32.totalorder 0, 0
    // Predicated region
    $region26: #{tpu_custom_call.1} parent=1 // pred_check
      %p95 = pneg %p94
    $region27: #{tpu_custom_call.1} parent=1 // pred_check_branch
      %97 = sbr.rel (%p95) target = $region29
    $region28: #{tpu_custom_call.1} parent=1 // pred_region
      %98 = vst [vmem:[#allocation2] sm:$0xff] 0.0
      %v99 = vlaneseq
      %vm100 = vcmp.ge.s32.totalorder %v99, 0
      %vm101 = vcmp.lt.s32.totalorder %v99, 256
      %vm102 = vmand %vm100, %vm101
      %103 = vst.msk [vmem:[#allocation3] sm:$0x3] %vm102, 0.0
    $region29: #{tpu_custom_call.1} parent=1 // pred_fallthru
      _
    %v104 = vld [vmem:[#allocation4] sm:$0xff]
    %v105 = vld [vmem:[#allocation4 + $0x8] sm:$0xff]
    %v106 = vld [vmem:[#allocation7] sm:$0xff]
    %v107 = vld [vmem:[#allocation7 + $0x8] sm:$0xff]
    %v108 = vld [vmem:[#allocation9] sm:$0x3]
    %v109 = vld [vmem:[#allocation9 + $0x2] sm:$0x3]
    %v110 = vsub.f32 %v104, %v106
    %v111 = vsub.f32 %v105, %v107
    %v112 = vand.u32 2147483647, %v110
    %v113 = vand.u32 2147483647, %v111
    %v116 = vperm.slane %v108, 0
    %v117 = vperm.slane %v108, 1
    %v118 = vperm.slane %v109, 0
    %v119 = vperm.slane %v109, 1
    %v120 = vrot.slane %v117, 4
    %v121 = vrot.slane %v119, 4
    %vm122 = vcmask 1043456
    %v123 = vsel %vm122, %v116, %v120
    %v124 = vsel %vm122, %v118, %v121
    %v127 = vmul.f32 %v112, %v123
    %v128 = vmul.f32 %v113, %v124
    %v129 = vld [vmem:[#allocation2] sm:$0xff]
    %132 = vst [vmem:[#allocation1] ss:$2 sm:$0xff] %v127
    %v133 = vld.sshfl [vmem:[#allocation1] sm:$0xff pattern:$0x75316420]
    %v134 = vld.sshfl [vmem:[#allocation1 + $0x8] sm:$0xff pattern:$0x75316420]
    %s135 = scalar_lea.vmem [#allocation1], 16
    %136 = vst [vmem:[%s135] ss:$2 sm:$0xff] %v128
    %v137 = vld.sshfl [vmem:[#allocation1 + $0x10] sm:$0xff pattern:$0x75316420]
    %v138 = vld.sshfl [vmem:[#allocation1 + $0x18] sm:$0xff pattern:$0x75316420]
    %v143 = vsel %vm122, %v133, 0.0
    %v144 = vsel %vm122, %v137, 0.0
    %v145 = vadd.f32 %v143, %v144
    %v146 = vsel %vm122, %v134, 0.0
    %v147 = vsel %vm122, %v138, 0.0
    %v148 = vadd.f32 %v146, %v147
    %v151 = vrot.slane %v148, 4
    %v152 = vsel %vm122, %v145, %v151
    %v154 = vadd.f32 %v129, %v152
    %155 = vst [vmem:[#allocation2] sm:$0xff] %v154
    %v156 = vld [vmem:[#allocation3] sm:$0x3]
    %vm161 = vcmask 1040384
    %v162 = vsel %vm161, %v116, 0.0
    %v163 = vsel %vm161, %v118, 0.0
    %v164 = vadd.f32 %v162, %v163
    %v165 = vsel %vm161, %v117, 0.0
    %v166 = vsel %vm161, %v119, 0.0
    %v167 = vadd.f32 %v165, %v166
    %v170 = vrot.slane %v167, 7
    %v171 = vsel %vm161, %v164, %v170
    %v173 = vadd.f32 %v156, %v171
    %v174 = vlaneseq
    %vm175 = vcmp.ge.s32.totalorder %v174, 0
    %vm176 = vcmp.lt.s32.totalorder %v174, 256
    %vm177 = vmand %vm175, %vm176
    %178 = vst.msk [vmem:[#allocation3] sm:$0x3] %vm177, %v173
    // Predicated region
    $region30: #{tpu_custom_call.1} parent=1 // pred_check
      %p179 = pneg %p94
    $region31: #{tpu_custom_call.1} parent=1 // pred_check_branch
      %181 = sbr.rel (%p179) target = $region33
    $region32: #{tpu_custom_call.1} parent=1 // pred_region
      %v182 = vld [vmem:[#allocation2] sm:$0xff]
      %184 = vst [vmem:[#allocation1] ss:$2 sm:$0xff] %v182
      %v185 = vld.sshfl [vmem:[#allocation1] sm:$0xff pattern:$0x75316420]
      %v186 = vld.sshfl [vmem:[#allocation1 + $0x8] sm:$0xff pattern:$0x75316420]
      %v189 = vsel %vm122, %v185, 0.0
      %v190 = vsel %vm122, %v186, 0.0
      %v191 = vadd.f32 %v189, %v190
      %192 = vadd.xlane.f32.xlu0 %v191
      %v193 = vpop.xlane.xlu0 %192
      %v194 = vrot.slane %v193, 4
      %v195 = vadd.f32 %v193, %v194
      %v196 = vrot.slane %v195, 2
      %v197 = vadd.f32 %v195, %v196
      %v198 = vrot.slane %v197, 1
      %v199 = vadd.f32 %v197, %v198
      %s200 = vtos %v199
      %s201 = scalar_lea.smem [#allocation10], 0
      %202 = sst [smem:[%s201]] %s200
      %v203 = vld [vmem:[#allocation3] sm:$0x3]
      %v205 = vperm.slane %v203, 0
      %v206 = vperm.slane %v203, 1
      %v209 = vsel %vm161, %v205, 0.0
      %v210 = vsel %vm161, %v206, 0.0
      %v211 = vadd.f32 %v209, %v210
      %212 = vadd.xlane.f32.xlu0 %v211
      %v213 = vpop.xlane.xlu0 %212
      %v214 = vrot.slane %v213, 4
      %v215 = vadd.f32 %v213, %v214
      %v216 = vrot.slane %v215, 2
      %v217 = vadd.f32 %v215, %v216
      %v218 = vrot.slane %v217, 1
      %v219 = vadd.f32 %v217, %v218
      %s220 = vtos %v219
      %s221 = scalar_lea.smem [#allocation11], 0
      %222 = sst [smem:[%s221]] %s220
    $region33: #{tpu_custom_call.1} parent=1 // pred_fallthru
      _
    // Predicated region
    $region34: #{tpu_custom_call.1} parent=1 // pred_check
      _
    $region35: #{tpu_custom_call.1} parent=1 // pred_check_branch
      %224 = sbr.rel (0) target = $region37
    $region36: #{tpu_custom_call.1} parent=1 // pred_region
      %226 = vsyncadd [#allocation6], 0
      %s228 = sshll.u32 %s3, 4
      %s229 = int_to_ptr.hbm [resolvable:$true] %s228
      %231 = dma.smem_to_hbm [#allocation10], 16, %s229, [#allocation6]
    $region37: #{tpu_custom_call.1} parent=1 // pred_fallthru
      _
    // Predicated region
    $region38: #{tpu_custom_call.1} parent=1 // pred_check
      _
    $region39: #{tpu_custom_call.1} parent=1 // pred_check_branch
      %233 = sbr.rel (0) target = $region41
    $region40: #{tpu_custom_call.1} parent=1 // pred_region
      %235 = vsyncadd [#allocation12], 0
      %s237 = sshll.u32 %s4, 4
      %s238 = int_to_ptr.hbm [resolvable:$true] %s237
      %240 = dma.smem_to_hbm [#allocation11], 16, %s238, [#allocation12]
    $region41: #{tpu_custom_call.1} parent=1 // pred_fallthru
      _
    // Predicated region
    $region42: #{tpu_custom_call.1} parent=1 // pred_check
      _
    $region43: #{tpu_custom_call.1} parent=1 // pred_check_branch
      %242 = sbr.rel (0) target = $region45
    $region44: #{tpu_custom_call.1} parent=1 // pred_region
      %244 = dma.done [#allocation6], 16
    $region45: #{tpu_custom_call.1} parent=1 // pred_fallthru
      _
    // Predicated region
    $region46: #{tpu_custom_call.1} parent=1 // pred_check
      _
    $region47: #{tpu_custom_call.1} parent=1 // pred_check_branch
      %246 = sbr.rel (0) target = $region49
    $region48: #{tpu_custom_call.1} parent=1 // pred_region
      %248 = dma.done [#allocation12], 16
    $region49: #{tpu_custom_call.1} parent=1 // pred_fallthru
      _
    %249 = sfence
    %250 = vsyncpa [#allocation5], 1
    %251 = vsyncpa [#allocation8], 1
    %252 = vsyncpa [#allocation6], 1
    %253 = vsyncpa [#allocation12], 1

</llo_original>
